<compile_context>
chip_gen: v6e
topology: v6e:2x2x1
jax: 0.10.0
libtpu: 0.0.40
codegen_flags: <defaults>
</compile_context>

<pallas_src>
import jax
import jax.numpy as jnp
from jax import lax
from jax.experimental import pallas as pl
from jax.experimental.pallas import tpu as pltpu


def _make_policy_kernel(state_space: int, action_space: int,
                        use_vpu_layer1: bool, use_bf16_mxu: bool):
    """Build the kernel with the layer-1 / softmax strategies fixed at trace time."""

    def kernel(state_ref, w1_ref, b1_ref, w2_ref, b2_ref, out_ref):
        # state: (TB, S) f32, w1: (S, H), b1: (1, H), w2: (H, A), b2: (1, A)
        x = state_ref[...]

        # ---- layer 1: state @ W1^T + b1, relu --------------------------------
        if use_vpu_layer1:
            # Tiny K (CartPole S=4) AND tiny batch tile: unrolled broadcast-FMAs
            # on the VPU (MXU push/pop latency dominates at this size).
            acc = x[:, 0:1] * w1_ref[0:1, :]
            for k in range(1, state_space):
                acc = acc + x[:, k:k + 1] * w1_ref[k:k + 1, :]
        else:
            # Large batch tiles: the per-column lane broadcasts of the VPU path
            # would saturate the XLU slot, so route layer 1 to the idle MXU.
            a_in, w_in = x, w1_ref[...]
            if use_bf16_mxu:
                a_in = a_in.astype(jnp.bfloat16)
                w_in = w_in.astype(jnp.bfloat16)
            acc = jnp.dot(a_in, w_in, preferred_element_type=jnp.float32)

        h = jnp.maximum(acc + b1_ref[...], 0.0)                     # (TB, H) f32

        # ---- layer 2: h @ W2 (pre-transposed to (H, A)) + b2 -----------------
        h_in, w2_in = h, w2_ref[...]
        if (not use_vpu_layer1) and use_bf16_mxu:
            h_in = h_in.astype(jnp.bfloat16)
            w2_in = w2_in.astype(jnp.bfloat16)
        logits = jnp.dot(h_in, w2_in, preferred_element_type=jnp.float32) \
            + b2_ref[...]                                           # (TB, A)

        # ---- softmax along dim=1 (action axis, last dim here) ----------------
        # NOTE: when B % tb != 0, padded rows of the last block flow through this
        # math; sigmoid/exp of garbage cannot corrupt real rows (writeback is
        # masked by Pallas), so it is benign.
        if action_space == 2:
            # softmax of 2 logits == [sigmoid(l0-l1), 1 - sigmoid(l0-l1)].
            # Drops the 2-wide cross-lane max/sum reductions and halves exp.
            p0 = jax.nn.sigmoid(logits[:, 0:1] - logits[:, 1:2])    # (TB, 1)
            col = lax.broadcasted_iota(jnp.int32, logits.shape, 1)  # (TB, A)
            out = jnp.where(col == 0, p0, 1.0 - p0)
        else:
            m = jnp.max(logits, axis=-1, keepdims=True)
            e = jnp.exp(logits - m)
            # Exact divide (denominator is a (TB,1) column -> negligible cost);
            # keeps probability rows summing to 1 to f32 precision.
            out = e / jnp.sum(e, axis=-1, keepdims=True)

        out_ref[...] = out.astype(out_ref.dtype)

    return kernel


def prepare_policy_params(w1, b1, w2, b2):
    """One-time parameter prep (hoisted out of the per-call hot path).

    w1: (H, S), b1: (H,), w2: (A, H), b2: (A,)  -- torch.nn.Linear layout.
    Returns (w1_t (S,H), b1 (1,H), w2_t (H,A), b2 (1,A)) all f32.
    """
    H, S = w1.shape
    A = w2.shape[0]
    w1_t = jnp.asarray(w1, jnp.float32).T            # (S, H)
    b1_r = jnp.asarray(b1, jnp.float32).reshape(1, H)
    w2_t = jnp.asarray(w2, jnp.float32).T            # (H, A): no per-step transpose
    b2_r = jnp.asarray(b2, jnp.float32).reshape(1, A)
    return (w1_t, b1_r, w2_t, b2_r)


def vanilla_policy_gradient_forward(state, params, *, block_b=2048,
                                    use_bf16_mxu=False):
    """state: (B, S) f32; params from prepare_policy_params."""
    w1_t, b1_r, w2_t, b2_r = params
    B, S = state.shape
    H = w1_t.shape[1]
    A = w2_t.shape[1]

    # Batch tile: large by default to amortize per-grid-step overhead; rounded to
    # a multiple of 8 (sublane) when it does not cover the whole batch.
    if block_b >= B:
        tb = B
    else:
        tb = max(8, (block_b // 8) * 8)
    grid = (pl.cdiv(B, tb),)

    # VPU layer-1 path only when both the contraction AND the batch tile are tiny.
    use_vpu_layer1 = (S <= 16) and (tb <= 64)

    kernel = _make_policy_kernel(S, A, use_vpu_layer1, use_bf16_mxu)

    # Explicit VMEM budget (double-buffered IO tiles + resident weights + the
    # (tb, H) f32 intermediates), clamped to stay safe on v7x's 64 MiB per TC.
    f32b = 4
    weight_bytes = (S * H + H + H * A + A) * f32b
    io_bytes = 2 * tb * S * f32b + 2 * tb * A * f32b
    tmp_bytes = 4 * tb * H * f32b
    vmem_limit = int(min(64 * 1024 * 1024,
                         max(16 * 1024 * 1024,
                             2 * (weight_bytes + io_bytes + tmp_bytes))))

    return pl.pallas_call(
        kernel,
        out_shape=jax.ShapeDtypeStruct((B, A), jnp.float32),
        grid=grid,
        in_specs=[
            pl.BlockSpec((tb, S), lambda i: (i, 0)),   # state tile per grid step
            pl.BlockSpec((S, H), lambda i: (0, 0)),    # weights/biases resident
            pl.BlockSpec((1, H), lambda i: (0, 0)),
            pl.BlockSpec((H, A), lambda i: (0, 0)),
            pl.BlockSpec((1, A), lambda i: (0, 0)),
        ],
        out_specs=pl.BlockSpec((tb, A), lambda i: (i, 0)),
        compiler_params=pltpu.CompilerParams(
            dimension_semantics=("parallel",),          # batch axis shards TCs on v7x
            vmem_limit_bytes=vmem_limit,
        ),
    )(state, w1_t, b1_r, w2_t, b2_r)


def _init_linear(key, out_features, in_features):
    # Deterministic init mimicking torch.nn.Linear default: U(-k, k), k=1/sqrt(fan_in)
    k = 1.0 / jnp.sqrt(jnp.float32(in_features))
    kw, kb = jax.random.split(key)
    w = jax.random.uniform(kw, (out_features, in_features), jnp.float32, -k, k)
    b = jax.random.uniform(kb, (out_features,), jnp.float32, -k, k)
    return w, b


def _reference_forward(state, w1, b1, w2, b2):
    h = jnp.maximum(state @ w1.T + b1, 0.0)
    logits = h @ w2.T + b2
    return jax.nn.softmax(logits, axis=1)


if __name__ == "__main__":
    # CartPole-ish sizes: state_space=4, action_space=2, hidden_size=256, batch=16
    state_space, action_space, hidden_size, batch = 4, 2, 256, 16

    key = jax.random.PRNGKey(0)
    k_state, k_l1, k_l2 = jax.random.split(key, 3)

    state = jax.random.normal(k_state, (batch, state_space), jnp.float32)
    w1, b1 = _init_linear(k_l1, hidden_size, state_space)
    w2, b2 = _init_linear(k_l2, action_space, hidden_size)

    # One-time parameter prep (not in the per-call hot path).
    params = prepare_policy_params(w1, b1, w2, b2)

    # block_b=8 -> grid=(2,): exercises the pipelined/parallel batch axis.
    out = vanilla_policy_gradient_forward(state, params, block_b=8)
    out = jax.block_until_ready(out)

    ref = _reference_forward(state, w1, b1, w2, b2)
    assert out.shape == (batch, action_space)
    assert jnp.allclose(out, ref, atol=1e-5, rtol=1e-5), "mismatch vs JAX reference"
    # rows of a softmax must sum to 1 (exact divide / sigmoid complement now)
    assert jnp.allclose(jnp.sum(out, axis=1), 1.0, atol=1e-5)

    print("KERNEL_OK")
</pallas_src>

<mosaic_0001>
module attributes {stable_mosaic.version = 11 : i64} {
  func.func @kernel(%arg0: i32, %arg1: memref<8x4xf32, #tpu.memory_space<vmem>>, %arg2: memref<4x256xf32, #tpu.memory_space<vmem>>, %arg3: memref<1x256xf32, #tpu.memory_space<vmem>>, %arg4: memref<256x2xf32, #tpu.memory_space<vmem>>, %arg5: memref<1x2xf32, #tpu.memory_space<vmem>>, %arg6: memref<8x2xf32, #tpu.memory_space<vmem>>) attributes {dimension_semantics = [#tpu.dimension_semantics<parallel>], iteration_bounds = array<i64: 2>, scalar_prefetch = 0 : i64, scratch_operands = 0 : i64, tpu.core_type = #tpu.core_type<tc>, window_params = [{transform_indices = @transform_0, window_bounds = array<i64: 8, 4>}, {pipeline_mode = #tpu.pipeline_mode<synchronous>, transform_indices = @transform_1, window_bounds = array<i64: 4, 256>}, {pipeline_mode = #tpu.pipeline_mode<synchronous>, transform_indices = @transform_2, window_bounds = array<i64: 1, 256>}, {pipeline_mode = #tpu.pipeline_mode<synchronous>, transform_indices = @transform_3, window_bounds = array<i64: 256, 2>}, {pipeline_mode = #tpu.pipeline_mode<synchronous>, transform_indices = @transform_4, window_bounds = array<i64: 1, 2>}, {transform_indices = @transform_5, window_bounds = array<i64: 8, 2>}]} {
    %c0 = arith.constant 0 : index
    %c0_0 = arith.constant 0 : index
    %0 = vector.load %arg1[%c0, %c0_0] : memref<8x4xf32, #tpu.memory_space<vmem>>, vector<8x4xf32>
    %1 = vector.extract_strided_slice %0 {offsets = [0, 0], sizes = [8, 1], strides = [1, 1]} : vector<8x4xf32> to vector<8x1xf32>
    %c0_1 = arith.constant 0 : index
    %c0_2 = arith.constant 0 : index
    %2 = vector.load %arg2[%c0_1, %c0_2] : memref<4x256xf32, #tpu.memory_space<vmem>>, vector<1x256xf32>
    %3 = vector.broadcast %1 : vector<8x1xf32> to vector<8x256xf32>
    %4 = vector.broadcast %2 : vector<1x256xf32> to vector<8x256xf32>
    %5 = arith.mulf %3, %4 : vector<8x256xf32>
    %6 = vector.extract_strided_slice %0 {offsets = [0, 1], sizes = [8, 1], strides = [1, 1]} : vector<8x4xf32> to vector<8x1xf32>
    %c1 = arith.constant 1 : index
    %c0_3 = arith.constant 0 : index
    %7 = vector.load %arg2[%c1, %c0_3] : memref<4x256xf32, #tpu.memory_space<vmem>>, vector<1x256xf32>
    %8 = vector.broadcast %6 : vector<8x1xf32> to vector<8x256xf32>
    %9 = vector.broadcast %7 : vector<1x256xf32> to vector<8x256xf32>
    %10 = arith.mulf %8, %9 : vector<8x256xf32>
    %11 = arith.addf %5, %10 : vector<8x256xf32>
    %12 = vector.extract_strided_slice %0 {offsets = [0, 2], sizes = [8, 1], strides = [1, 1]} : vector<8x4xf32> to vector<8x1xf32>
    %c2 = arith.constant 2 : index
    %c0_4 = arith.constant 0 : index
    %13 = vector.load %arg2[%c2, %c0_4] : memref<4x256xf32, #tpu.memory_space<vmem>>, vector<1x256xf32>
    %14 = vector.broadcast %12 : vector<8x1xf32> to vector<8x256xf32>
    %15 = vector.broadcast %13 : vector<1x256xf32> to vector<8x256xf32>
    %16 = arith.mulf %14, %15 : vector<8x256xf32>
    %17 = arith.addf %11, %16 : vector<8x256xf32>
    %18 = vector.extract_strided_slice %0 {offsets = [0, 3], sizes = [8, 1], strides = [1, 1]} : vector<8x4xf32> to vector<8x1xf32>
    %c3 = arith.constant 3 : index
    %c0_5 = arith.constant 0 : index
    %19 = vector.load %arg2[%c3, %c0_5] : memref<4x256xf32, #tpu.memory_space<vmem>>, vector<1x256xf32>
    %20 = vector.broadcast %18 : vector<8x1xf32> to vector<8x256xf32>
    %21 = vector.broadcast %19 : vector<1x256xf32> to vector<8x256xf32>
    %22 = arith.mulf %20, %21 : vector<8x256xf32>
    %23 = arith.addf %17, %22 : vector<8x256xf32>
    %c0_6 = arith.constant 0 : index
    %c0_7 = arith.constant 0 : index
    %24 = vector.load %arg3[%c0_6, %c0_7] : memref<1x256xf32, #tpu.memory_space<vmem>>, vector<1x256xf32>
    %25 = vector.broadcast %24 : vector<1x256xf32> to vector<8x256xf32>
    %26 = arith.addf %23, %25 : vector<8x256xf32>
    %cst = arith.constant 0.000000e+00 : f32
    %27 = vector.broadcast %cst : f32 to vector<8x256xf32>
    %28 = arith.maximumf %26, %27 : vector<8x256xf32>
    %c0_8 = arith.constant 0 : index
    %c0_9 = arith.constant 0 : index
    %29 = vector.load %arg4[%c0_8, %c0_9] : memref<256x2xf32, #tpu.memory_space<vmem>>, vector<256x2xf32>
    %cst_10 = arith.constant dense<0.000000e+00> : vector<8x2xf32>
    %30 = tpu.matmul %28, %29, %cst_10 {dimension_numbers = #tpu.dot_dimension_numbers<[1], [0], [0], [1], [0, 0, 1, 1], [], []>} : vector<8x256xf32>, vector<256x2xf32>, vector<8x2xf32> -> vector<8x2xf32>
    %c0_11 = arith.constant 0 : index
    %c0_12 = arith.constant 0 : index
    %31 = vector.load %arg5[%c0_11, %c0_12] : memref<1x2xf32, #tpu.memory_space<vmem>>, vector<1x2xf32>
    %32 = vector.broadcast %31 : vector<1x2xf32> to vector<8x2xf32>
    %33 = arith.addf %30, %32 : vector<8x2xf32>
    %34 = vector.extract_strided_slice %33 {offsets = [0, 0], sizes = [8, 1], strides = [1, 1]} : vector<8x2xf32> to vector<8x1xf32>
    %35 = vector.extract_strided_slice %33 {offsets = [0, 1], sizes = [8, 1], strides = [1, 1]} : vector<8x2xf32> to vector<8x1xf32>
    %36 = arith.subf %34, %35 : vector<8x1xf32>
    %37 = arith.negf %36 : vector<8x1xf32>
    %38 = math.exp %37 : vector<8x1xf32>
    %cst_13 = arith.constant 1.000000e+00 : f32
    %39 = vector.broadcast %cst_13 : f32 to vector<8x1xf32>
    %40 = arith.addf %39, %38 : vector<8x1xf32>
    %41 = arith.divf %39, %40 : vector<8x1xf32>
    %42 = tpu.iota {dimensions = array<i32: 1>} : vector<8x2xi32>
    %c0_i32 = arith.constant 0 : i32
    %43 = vector.broadcast %c0_i32 : i32 to vector<8x2xi32>
    %44 = arith.cmpi eq, %42, %43 : vector<8x2xi32>
    %cst_14 = arith.constant 1.000000e+00 : f32
    %45 = vector.broadcast %cst_14 : f32 to vector<8x1xf32>
    %46 = arith.subf %45, %41 : vector<8x1xf32>
    %47 = vector.shape_cast %41 : vector<8x1xf32> to vector<8x1xf32>
    %48 = vector.broadcast %47 : vector<8x1xf32> to vector<8x2xf32>
    %49 = vector.shape_cast %46 : vector<8x1xf32> to vector<8x1xf32>
    %50 = vector.broadcast %49 : vector<8x1xf32> to vector<8x2xf32>
    %51 = arith.select %44, %48, %50 : vector<8x2xi1>, vector<8x2xf32>
    %c0_15 = arith.constant 0 : index
    %c0_16 = arith.constant 0 : index
    %52 = vector.load %arg6[%c0_15, %c0_16] : memref<8x2xf32, #tpu.memory_space<vmem>>, vector<8x2xf32>
    tpu.vector_store %arg6[%c0_15, %c0_16], %51 {strides = array<i32>} : memref<8x2xf32, #tpu.memory_space<vmem>>, vector<8x2xf32>,
    return
  }
  func.func @transform_0(%arg0: i32) -> (i32, i32) {
    %c0_i32 = arith.constant 0 : i32
    %c0_i32_0 = arith.constant 0 : i32
    return %arg0, %c0_i32 : i32, i32
  }
  func.func @transform_1(%arg0: i32) -> (i32, i32) {
    %c0_i32 = arith.constant 0 : i32
    %c0_i32_0 = arith.constant 0 : i32
    %c0_i32_1 = arith.constant 0 : i32
    return %c0_i32, %c0_i32_0 : i32, i32
  }
  func.func @transform_2(%arg0: i32) -> (i32, i32) {
    %c0_i32 = arith.constant 0 : i32
    %c0_i32_0 = arith.constant 0 : i32
    %c0_i32_1 = arith.constant 0 : i32
    return %c0_i32, %c0_i32_0 : i32, i32
  }
  func.func @transform_3(%arg0: i32) -> (i32, i32) {
    %c0_i32 = arith.constant 0 : i32
    %c0_i32_0 = arith.constant 0 : i32
    %c0_i32_1 = arith.constant 0 : i32
    return %c0_i32, %c0_i32_0 : i32, i32
  }
  func.func @transform_4(%arg0: i32) -> (i32, i32) {
    %c0_i32 = arith.constant 0 : i32
    %c0_i32_0 = arith.constant 0 : i32
    %c0_i32_1 = arith.constant 0 : i32
    return %c0_i32, %c0_i32_0 : i32, i32
  }
  func.func @transform_5(%arg0: i32) -> (i32, i32) {
    %c0_i32 = arith.constant 0 : i32
    %c0_i32_0 = arith.constant 0 : i32
    return %arg0, %c0_i32 : i32, i32
  }
}

</mosaic_0001>

<llo_original>
// kernel: tpu_custom_call.1
$region0: #{tpu_custom_call.1}
  #allocation0 [shape = 'u32[]', space=smem, size = 0x4, offset = 0x4, fixed_abs, tag = 'smem constant byte address 0x4 - core index']
  #allocation1 [shape = 'u32[144,128]{1,0:T(1,128)}', space=vmem, size = 0x12000, scoped, tag = 'internal scratch']
  %s0 = inlined_call_operand.vmem [shape: f32[16,4], index: 0, kind: input, shape index: {}]
  %s1 = inlined_call_operand.vmem [shape: f32[4,256], index: 1, kind: input, shape index: {}]
  %s2 = inlined_call_operand.vmem [shape: f32[1,256], index: 2, kind: input, shape index: {}]
  %s3 = inlined_call_operand.vmem [shape: f32[256,2], index: 3, kind: input, shape index: {}]
  %s4 = inlined_call_operand.vmem [shape: f32[1,2], index: 4, kind: input, shape index: {}]
  %s5 = inlined_call_operand.vmem [shape: f32[16,2], index: 5, kind: output, shape index: {}]
  %s6 = sld [smem:[#allocation0]]
  $region53: #{tpu_custom_call.1} parent=0
    _
  %s8 = ssub.s32 1, %s6
  %s9 = scalar_select 0, %s8, %s6
  loop: start=0, step=1, limit=4
  $region2: #{tpu_custom_call.1} parent=0 // loop_pre_header
    _
  $region3: #{tpu_custom_call.1} parent=0 // loop_header
    %s11 = sphi 0, %s15
    %p12 = scmp.ge.s32.totalorder %s11, 4
    %s21 = sphi 0, %s23
    %s24 = sphi 0, %s21
    %s25 = sphi 0, %s24
    %s41 = sphi 0, %s25
    %s45 = sphi 0, %s45
    %s47 = sphi 0, %s45
    %s48 = sphi 0, %s47
    %s62 = sphi 0, %s48
    %s66 = sphi 0, %s66
    %s68 = sphi 0, %s66
    %s69 = sphi 0, %s68
    %s83 = sphi 0, %s69
    %s87 = sphi 0, %s87
    %s89 = sphi 0, %s87
    %s90 = sphi 0, %s89
    %s104 = sphi 0, %s90
    %s108 = sphi 0, %s108
    %s110 = sphi 0, %s108
    %s111 = sphi 0, %s110
    %s125 = sphi 0, %s111
    %s131 = sphi 0, %s133
    %s134 = sphi 0, %s131
    %s135 = sphi 0, %s134
    %s151 = sphi 0, %s135
  $region4: #{tpu_custom_call.1} parent=0 // loop_header_branch
    %14 = sbr.rel (%p12) target = $region8
  $region5: #{tpu_custom_call.1} parent=0 // loop_body
    %s16 = ssub.s32 %s11, 1
    %s17 = ssub.s32 %s11, 2
    %s18 = sadd.s32 %s11, 1
    %s19 = ssub.s32 %s11, %s18
    %p20 = scmp.eq.s32.totalorder %s19, 0
    %s22 = sadd.s32 %s21, 1
    %s23 = scalar_select %p20, %s21, %s22
    %p26 = pneg %p20
    %p27 = scmp.eq.s32.totalorder %s11, 1
    %p28 = por %p26, %p27
    %p29 = scmp.ne.s32.totalorder %s21, %s24
    %p30 = scmp.eq.s32.totalorder %s11, 0
    %p31 = por %p29, %p30
    %p32 = scmp.ne.s32.totalorder %s21, %s24
    %p33 = scmp.eq.s32.totalorder %s16, 1
    %p34 = por %p32, %p33
    %p35 = scmp.ne.s32.totalorder %s24, %s25
    %p36 = scmp.eq.s32.totalorder %s16, 0
    %p37 = por %p35, %p36
    %p38 = scmp.ne.s32.totalorder %s24, %s25
    %p39 = scmp.eq.s32.totalorder %s17, 1
    %p40 = por %p38, %p39
    %p42 = scmp.ne.s32.totalorder %s25, %s41
    %p43 = scmp.eq.s32.totalorder %s17, 0
    %p44 = por %p42, %p43
    %s46 = sadd.s32 %s45, 1
    %p49 = scmp.eq.s32.totalorder %s11, 1
    %p50 = scmp.ne.s32.totalorder %s45, %s47
    %p51 = scmp.eq.s32.totalorder %s11, 0
    %p52 = por %p50, %p51
    %p53 = scmp.ne.s32.totalorder %s45, %s47
    %p54 = scmp.eq.s32.totalorder %s16, 1
    %p55 = por %p53, %p54
    %p56 = scmp.ne.s32.totalorder %s47, %s48
    %p57 = scmp.eq.s32.totalorder %s16, 0
    %p58 = por %p56, %p57
    %p59 = scmp.ne.s32.totalorder %s47, %s48
    %p60 = scmp.eq.s32.totalorder %s17, 1
    %p61 = por %p59, %p60
    %p63 = scmp.ne.s32.totalorder %s48, %s62
    %p64 = scmp.eq.s32.totalorder %s17, 0
    %p65 = por %p63, %p64
    %s67 = sadd.s32 %s66, 1
    %p70 = scmp.eq.s32.totalorder %s11, 1
    %p71 = scmp.ne.s32.totalorder %s66, %s68
    %p72 = scmp.eq.s32.totalorder %s11, 0
    %p73 = por %p71, %p72
    %p74 = scmp.ne.s32.totalorder %s66, %s68
    %p75 = scmp.eq.s32.totalorder %s16, 1
    %p76 = por %p74, %p75
    %p77 = scmp.ne.s32.totalorder %s68, %s69
    %p78 = scmp.eq.s32.totalorder %s16, 0
    %p79 = por %p77, %p78
    %p80 = scmp.ne.s32.totalorder %s68, %s69
    %p81 = scmp.eq.s32.totalorder %s17, 1
    %p82 = por %p80, %p81
    %p84 = scmp.ne.s32.totalorder %s69, %s83
    %p85 = scmp.eq.s32.totalorder %s17, 0
    %p86 = por %p84, %p85
    %s88 = sadd.s32 %s87, 1
    %p91 = scmp.eq.s32.totalorder %s11, 1
    %p92 = scmp.ne.s32.totalorder %s87, %s89
    %p93 = scmp.eq.s32.totalorder %s11, 0
    %p94 = por %p92, %p93
    %p95 = scmp.ne.s32.totalorder %s87, %s89
    %p96 = scmp.eq.s32.totalorder %s16, 1
    %p97 = por %p95, %p96
    %p98 = scmp.ne.s32.totalorder %s89, %s90
    %p99 = scmp.eq.s32.totalorder %s16, 0
    %p100 = por %p98, %p99
    %p101 = scmp.ne.s32.totalorder %s89, %s90
    %p102 = scmp.eq.s32.totalorder %s17, 1
    %p103 = por %p101, %p102
    %p105 = scmp.ne.s32.totalorder %s90, %s104
    %p106 = scmp.eq.s32.totalorder %s17, 0
    %p107 = por %p105, %p106
    %s109 = sadd.s32 %s108, 1
    %p112 = scmp.eq.s32.totalorder %s11, 1
    %p113 = scmp.ne.s32.totalorder %s108, %s110
    %p114 = scmp.eq.s32.totalorder %s11, 0
    %p115 = por %p113, %p114
    %p116 = scmp.ne.s32.totalorder %s108, %s110
    %p117 = scmp.eq.s32.totalorder %s16, 1
    %p118 = por %p116, %p117
    %p119 = scmp.ne.s32.totalorder %s110, %s111
    %p120 = scmp.eq.s32.totalorder %s16, 0
    %p121 = por %p119, %p120
    %p122 = scmp.ne.s32.totalorder %s110, %s111
    %p123 = scmp.eq.s32.totalorder %s17, 1
    %p124 = por %p122, %p123
    %p126 = scmp.ne.s32.totalorder %s111, %s125
    %p127 = scmp.eq.s32.totalorder %s17, 0
    %p128 = por %p126, %p127
    %s129 = ssub.s32 %s11, %s18
    %p130 = scmp.eq.s32.totalorder %s129, 0
    %s132 = sadd.s32 %s131, 1
    %s133 = scalar_select %p130, %s131, %s132
    %p136 = pneg %p130
    %p137 = scmp.eq.s32.totalorder %s11, 1
    %p138 = por %p136, %p137
    %p139 = scmp.ne.s32.totalorder %s131, %s134
    %p140 = scmp.eq.s32.totalorder %s11, 0
    %p141 = por %p139, %p140
    %p142 = scmp.ne.s32.totalorder %s131, %s134
    %p143 = scmp.eq.s32.totalorder %s16, 1
    %p144 = por %p142, %p143
    %p145 = scmp.ne.s32.totalorder %s134, %s135
    %p146 = scmp.eq.s32.totalorder %s16, 0
    %p147 = por %p145, %p146
    %p148 = scmp.ne.s32.totalorder %s134, %s135
    %p149 = scmp.eq.s32.totalorder %s17, 1
    %p150 = por %p148, %p149
    %p152 = scmp.ne.s32.totalorder %s135, %s151
    %p153 = scmp.eq.s32.totalorder %s17, 0
    %p154 = por %p152, %p153
    %p155 = scmp.le.s32.totalorder 1, %s11
    %p156 = scmp.lt.s32.totalorder %s11, 3
    %p157 = pnand %p155, %p156
    %p158 = pneg %p157
    // Predicated region
    $region9: #{tpu_custom_call.1} parent=5 // pred_check
      _
    $region10: #{tpu_custom_call.1} parent=5 // pred_check_branch
      %160 = sbr.rel (%p157) target = $region12
    $region11: #{tpu_custom_call.1} parent=5 // pred_region
      %s161 = ssub.s32 %s11, 1
      // Predicated region
      $region13: #{tpu_custom_call.1} parent=11 // pred_check
        %p162 = pneg %p58
      $region14: #{tpu_custom_call.1} parent=11 // pred_check_branch
        %164 = sbr.rel (%p162) target = $region16
      $region15: #{tpu_custom_call.1} parent=11 // pred_region
        _
      $region16: #{tpu_custom_call.1} parent=11 // pred_fallthru
        _
      // Predicated region
      $region17: #{tpu_custom_call.1} parent=11 // pred_check
        %p165 = pneg %p79
      $region18: #{tpu_custom_call.1} parent=11 // pred_check_branch
        %167 = sbr.rel (%p165) target = $region20
      $region19: #{tpu_custom_call.1} parent=11 // pred_region
        _
      $region20: #{tpu_custom_call.1} parent=11 // pred_fallthru
        _
      // Predicated region
      $region21: #{tpu_custom_call.1} parent=11 // pred_check
        %p168 = pneg %p100
      $region22: #{tpu_custom_call.1} parent=11 // pred_check_branch
        %170 = sbr.rel (%p168) target = $region24
      $region23: #{tpu_custom_call.1} parent=11 // pred_region
        _
      $region24: #{tpu_custom_call.1} parent=11 // pred_fallthru
        _
      // Predicated region
      $region25: #{tpu_custom_call.1} parent=11 // pred_check
        %p171 = pneg %p121
      $region26: #{tpu_custom_call.1} parent=11 // pred_check_branch
        %173 = sbr.rel (%p171) target = $region28
      $region27: #{tpu_custom_call.1} parent=11 // pred_region
        _
      $region28: #{tpu_custom_call.1} parent=11 // pred_fallthru
        _
    $region12: #{tpu_custom_call.1} parent=5 // pred_fallthru
      _
    %p174 = scmp.lt.s32.totalorder %s11, 2
    // Predicated region
    $region29: #{tpu_custom_call.1} parent=5 // pred_check
      %p175 = pneg %p174
    $region30: #{tpu_custom_call.1} parent=5 // pred_check_branch
      %177 = sbr.rel (%p175) target = $region32
    $region31: #{tpu_custom_call.1} parent=5 // pred_region
      // Predicated region
      $region33: #{tpu_custom_call.1} parent=31 // pred_check
        %p178 = pneg %p31
      $region34: #{tpu_custom_call.1} parent=31 // pred_check_branch
        %180 = sbr.rel (%p178) target = $region36
      $region35: #{tpu_custom_call.1} parent=31 // pred_region
        %p181 = scmp.lt.s32.totalorder %s11, 1
        %s182 = scalar_select %p181, %s11, 1
        %s183 = smul.addr %s182, 8
        %s184 = scalar_lea.vmem %s0, %s183
      $region36: #{tpu_custom_call.1} parent=31 // pred_fallthru
        _
    $region32: #{tpu_custom_call.1} parent=5 // pred_fallthru
      _
    %p185 = scmp.le.s32.totalorder 1, %s11
    %p186 = scmp.lt.s32.totalorder %s11, 3
    %p187 = pnand %p185, %p186
    %p188 = pneg %p187
    // Predicated region
    $region37: #{tpu_custom_call.1} parent=5 // pred_check
      _
    $region38: #{tpu_custom_call.1} parent=5 // pred_check_branch
      %190 = sbr.rel (%p187) target = $region40
    $region39: #{tpu_custom_call.1} parent=5 // pred_region
      %s191 = ssub.s32 %s11, 1
      %p192 = scmp.lt.s32.totalorder %s16, 1
      %s193 = scalar_select %p192, %s16, 1
      %s194 = smul.addr %s193, 8
      %s195 = scalar_lea.vmem %s0, %s194
      %p196 = pneg %p37
      %p197 = pneg %p34
      %p198 = pneg %p58
      %p199 = pneg %p55
      %p200 = pneg %p79
      %p201 = pneg %p76
      %p202 = pneg %p100
      %p203 = pneg %p97
      %p204 = pneg %p121
      %p205 = pneg %p118
      %p206 = pneg %p147
      %p207 = pneg %p144
      %p208 = scmp.lt.s32.totalorder %s16, 1
      %s209 = scalar_select %p208, %s16, 1
      %s210 = smul.addr %s209, 8
      %s211 = scalar_lea.vmem %s5, %s210
      %p212 = scmp.lt.s32.totalorder %s16, 1
      %s213 = scalar_select %p212, %s16, 1
      %s214 = smul.addr %s213, 8
      %s215 = scalar_lea.vmem %s0, %s214
      %p216 = scmp.lt.s32.totalorder %s16, 1
      %s217 = scalar_select %p216, %s16, 1
      %s218 = smul.addr %s217, 8
      %s219 = scalar_lea.vmem %s5, %s218
      %v220 = vld [vmem:[%s215] sm:$0xff]
      %v221 = vld [vmem:[%s1] ss:$4 sm:$0x3]
      %223 = vset.pattern.permute.xlu0 0
      %224 = vperm.xlu0 %223, %v220
      %v225 = vpop.permute.xlu0 %224
      %v228 = vlaneseq
      %v229 = vshrl.u32 %v228, 7
      %v230 = vsub.s32 0, %v229
      %v231 = vrot.slane %v221, %v230
      %v232 = vlaneseq
      %v233 = vshrl.u32 %v232, 7
      %v234 = vsub.s32 1, %v233
      %v235 = vrot.slane %v221, %v234
      %v238 = vmul.f32 %v225, %v231
      %v239 = vmul.f32 %v225, %v235
      %s240 = scalar_lea.vmem %s1, 1
      %v241 = vld [vmem:[%s240] ss:$4 sm:$0x3]
      %242 = vset.pattern.permute.xlu0 1
      %243 = vperm.xlu0 %242, %v220
      %v244 = vpop.permute.xlu0 %243
      %v247 = vlaneseq
      %v248 = vshrl.u32 %v247, 7
      %v249 = vsub.s32 0, %v248
      %v250 = vrot.slane %v241, %v249
      %v251 = vlaneseq
      %v252 = vshrl.u32 %v251, 7
      %v253 = vsub.s32 1, %v252
      %v254 = vrot.slane %v241, %v253
      %v257 = vmul.f32 %v244, %v250
      %v258 = vmul.f32 %v244, %v254
      %v259 = vadd.f32 %v238, %v257
      %v260 = vadd.f32 %v239, %v258
      %s261 = scalar_lea.vmem %s1, 2
      %v262 = vld [vmem:[%s261] ss:$4 sm:$0x3]
      %263 = vset.pattern.permute.xlu0 2
      %264 = vperm.xlu0 %263, %v220
      %v265 = vpop.permute.xlu0 %264
      %v268 = vlaneseq
      %v269 = vshrl.u32 %v268, 7
      %v270 = vsub.s32 0, %v269
      %v271 = vrot.slane %v262, %v270
      %v272 = vlaneseq
      %v273 = vshrl.u32 %v272, 7
      %v274 = vsub.s32 1, %v273
      %v275 = vrot.slane %v262, %v274
      %v278 = vmul.f32 %v265, %v271
      %v279 = vmul.f32 %v265, %v275
      %v280 = vadd.f32 %v259, %v278
      %v281 = vadd.f32 %v260, %v279
      %s282 = scalar_lea.vmem %s1, 3
      %v283 = vld [vmem:[%s282] ss:$4 sm:$0x3]
      %284 = vset.pattern.permute.xlu0 3
      %285 = vperm.xlu0 %284, %v220
      %v286 = vpop.permute.xlu0 %285
      %v289 = vlaneseq
      %v290 = vshrl.u32 %v289, 7
      %v291 = vsub.s32 0, %v290
      %v292 = vrot.slane %v283, %v291
      %v293 = vlaneseq
      %v294 = vshrl.u32 %v293, 7
      %v295 = vsub.s32 1, %v294
      %v296 = vrot.slane %v283, %v295
      %v299 = vmul.f32 %v286, %v292
      %v300 = vmul.f32 %v286, %v296
      %v301 = vadd.f32 %v280, %v299
      %v302 = vadd.f32 %v281, %v300
      %v303 = vld [vmem:[%s2] sm:$0x3]
      %v305 = vlaneseq
      %v306 = vshrl.u32 %v305, 7
      %v307 = vsub.s32 0, %v306
      %v308 = vrot.slane %v303, %v307
      %v309 = vlaneseq
      %v310 = vshrl.u32 %v309, 7
      %v311 = vsub.s32 1, %v310
      %v312 = vrot.slane %v303, %v311
      %v315 = vadd.f32 %v301, %v308
      %v316 = vadd.f32 %v302, %v312
      %v317 = vmax.f32 %v315, 0.0
      %v318 = vmax.f32 %v316, 0.0
      %v319 = vld [vmem:[%s3] sm:$0xff]
      %v320 = vld [vmem:[%s3 + $0x8] sm:$0xff]
      %v321 = vld [vmem:[%s3 + $0x10] sm:$0xff]
      %v322 = vld [vmem:[%s3 + $0x18] sm:$0xff]
      %v323 = vld [vmem:[%s3 + $0x20] sm:$0xff]
      %v324 = vld [vmem:[%s3 + $0x28] sm:$0xff]
      %v325 = vld [vmem:[%s3 + $0x30] sm:$0xff]
      %v326 = vld [vmem:[%s3 + $0x38] sm:$0xff]
      %v327 = vld [vmem:[%s3 + $0x40] sm:$0xff]
      %v328 = vld [vmem:[%s3 + $0x48] sm:$0xff]
      %v329 = vld [vmem:[%s3 + $0x50] sm:$0xff]
      %v330 = vld [vmem:[%s3 + $0x58] sm:$0xff]
      %v331 = vld [vmem:[%s3 + $0x60] sm:$0xff]
      %v332 = vld [vmem:[%s3 + $0x68] sm:$0xff]
      %v333 = vld [vmem:[%s3 + $0x70] sm:$0xff]
      %v334 = vld [vmem:[%s3 + $0x78] sm:$0xff]
      %v335 = vld [vmem:[%s3 + $0x80] sm:$0xff]
      %v336 = vld [vmem:[%s3 + $0x88] sm:$0xff]
      %v337 = vld [vmem:[%s3 + $0x90] sm:$0xff]
      %v338 = vld [vmem:[%s3 + $0x98] sm:$0xff]
      %v339 = vld [vmem:[%s3 + $0xa0] sm:$0xff]
      %v340 = vld [vmem:[%s3 + $0xa8] sm:$0xff]
      %v341 = vld [vmem:[%s3 + $0xb0] sm:$0xff]
      %v342 = vld [vmem:[%s3 + $0xb8] sm:$0xff]
      %v343 = vld [vmem:[%s3 + $0xc0] sm:$0xff]
      %v344 = vld [vmem:[%s3 + $0xc8] sm:$0xff]
      %v345 = vld [vmem:[%s3 + $0xd0] sm:$0xff]
      %v346 = vld [vmem:[%s3 + $0xd8] sm:$0xff]
      %v347 = vld [vmem:[%s3 + $0xe0] sm:$0xff]
      %v348 = vld [vmem:[%s3 + $0xe8] sm:$0xff]
      %v349 = vld [vmem:[%s3 + $0xf0] sm:$0xff]
      %v350 = vld [vmem:[%s3 + $0xf8] sm:$0xff]
      %v351 = vld [vmem:[%s4] sm:$0x1]
      %v353 = vlaneseq
      %v354 = vshrl.u32 %v353, 7
      %v355 = vsub.s32 0, %v354
      %v356 = vrot.slane %v351, %v355
      %358 = vmatprep.subr.mxu0 0.0
      %359 = vmatpush1.msra.mxu0 %v334
      %360 = vmatprep.subr.mxu0 0.0
      %361 = vmatpush1.msra.mxu0 %v333
      %362 = vmatprep.subr.mxu0 0.0
      %363 = vmatpush1.msra.mxu0 %v332
      %364 = vmatprep.subr.mxu0 0.0
      %365 = vmatpush1.msra.mxu0 %v331
      %366 = vmatprep.subr.mxu0 0.0
      %367 = vmatpush1.msra.mxu0 %v330
      %368 = vmatprep.subr.mxu0 0.0
      %369 = vmatpush1.msra.mxu0 %v329
      %370 = vmatprep.subr.mxu0 0.0
      %371 = vmatpush1.msra.mxu0 %v328
      %372 = vmatprep.subr.mxu0 0.0
      %373 = vmatpush1.msra.mxu0 %v327
      %374 = vmatprep.subr.mxu0 0.0
      %375 = vmatpush1.msra.mxu0 %v326
      %376 = vmatprep.subr.mxu0 0.0
      %377 = vmatpush1.msra.mxu0 %v325
      %378 = vmatprep.subr.mxu0 0.0
      %379 = vmatpush1.msra.mxu0 %v324
      %380 = vmatprep.subr.mxu0 0.0
      %381 = vmatpush1.msra.mxu0 %v323
      %382 = vmatprep.subr.mxu0 0.0
      %383 = vmatpush1.msra.mxu0 %v322
      %384 = vmatprep.subr.mxu0 0.0
      %385 = vmatpush1.msra.mxu0 %v321
      %386 = vmatprep.subr.mxu0 0.0
      %387 = vmatpush1.msra.mxu0 %v320
      %388 = vmatprep.subr.mxu0 0.0
      %389 = vmatpush1.msra.mxu0 %v319
      %390 = vmatprep.subr.mxu0 0.0
      %391 = vmatpush2.msra.mxu0 %v350
      %392 = vmatprep.subr.mxu0 0.0
      %393 = vmatpush2.msra.mxu0 %v349
      %394 = vmatprep.subr.mxu0 0.0
      %395 = vmatpush2.msra.mxu0 %v348
      %396 = vmatprep.subr.mxu0 0.0
      %397 = vmatpush2.msra.mxu0 %v347
      %398 = vmatprep.subr.mxu0 0.0
      %399 = vmatpush2.msra.mxu0 %v346
      %400 = vmatprep.subr.mxu0 0.0
      %401 = vmatpush2.msra.mxu0 %v345
      %402 = vmatprep.subr.mxu0 0.0
      %403 = vmatpush2.msra.mxu0 %v344
      %404 = vmatprep.subr.mxu0 0.0
      %405 = vmatpush2.msra.mxu0 %v343
      %406 = vmatprep.subr.mxu0 0.0
      %407 = vmatpush2.msra.mxu0 %v342
      %408 = vmatprep.subr.mxu0 0.0
      %409 = vmatpush2.msra.mxu0 %v341
      %410 = vmatprep.subr.mxu0 0.0
      %411 = vmatpush2.msra.mxu0 %v340
      %412 = vmatprep.subr.mxu0 0.0
      %413 = vmatpush2.msra.mxu0 %v339
      %414 = vmatprep.subr.mxu0 0.0
      %415 = vmatpush2.msra.mxu0 %v338
      %416 = vmatprep.subr.mxu0 0.0
      %417 = vmatpush2.msra.mxu0 %v337
      %418 = vmatprep.subr.mxu0 0.0
      %419 = vmatpush2.msra.mxu0 %v336
      %420 = vmatprep.subr.mxu0 0.0
      %421 = vmatpush2.msra.mxu0 %v335
      %422 = vmatprep.mubr.f32.mxu0 %v318
      %423 = vmatmul.mubr.f32.gmra.mxu0 %v317
      %v424 = vpop.f32.mrf.mxu0
      %v425 = vadd.f32 %v356, %v424
      %v426 = vpop.f32.mrf.mxu0
      %427 = vdwg.mxu0
      %429 = vrot.lane.b32.xlu0 %v425, 127
      %v430 = vpop.permute.xlu0 %429
      %v432 = vsub.f32 %v425, %v430
      %v433 = vxor.u32 %v432, 2147483648
      %v434 = vmul.f32 %v433, 1.442695
      %v435 = vpow.pop %v434
      %v436 = vadd.f32 %v435, 1.0
      %v437 = vrcp.pop %v436
      %v438 = vmul.f32 1.0, %v437
      %v439 = vlaneseq
      %v440 = vand.u32 %v439, 127
      %vm441 = vcmp.eq.s32.totalorder %v440, 0
      %v442 = vsub.f32 1.0, %v438
      %444 = vset.pattern.permute.xlu0 0
      %445 = vperm.xlu0 %444, %v438
      %v446 = vpop.permute.xlu0 %445
      %449 = vset.pattern.permute.xlu0 0
      %450 = vperm.xlu0 %449, %v442
      %v451 = vpop.permute.xlu0 %450
      %v453 = vsel %vm441, %v446, %v451
      %vm454 = vcmask 15360
      %455 = vst.msk [vmem:[%s219] sm:$0xff] %vm454, %v453
      %p456 = scmp.lt.s32.totalorder %s16, 1
      %s457 = scalar_select %p456, %s16, 1
      %s458 = smul.addr %s457, 8
      %s459 = scalar_lea.vmem %s5, %s458
      // Predicated region
      $region41: #{tpu_custom_call.1} parent=39 // pred_check
        %p460 = pneg %p144
      $region42: #{tpu_custom_call.1} parent=39 // pred_check_branch
        %462 = sbr.rel (%p460) target = $region44
      $region43: #{tpu_custom_call.1} parent=39 // pred_region
        _
      $region44: #{tpu_custom_call.1} parent=39 // pred_fallthru
        _
    $region40: #{tpu_custom_call.1} parent=5 // pred_fallthru
      _
    %p463 = scmp.le.s32.totalorder 2, %s11
    // Predicated region
    $region45: #{tpu_custom_call.1} parent=5 // pred_check
      %p464 = pneg %p463
    $region46: #{tpu_custom_call.1} parent=5 // pred_check_branch
      %466 = sbr.rel (%p464) target = $region48
    $region47: #{tpu_custom_call.1} parent=5 // pred_region
      %s467 = ssub.s32 %s11, 2
      // Predicated region
      $region49: #{tpu_custom_call.1} parent=47 // pred_check
        %p468 = pneg %p150
      $region50: #{tpu_custom_call.1} parent=47 // pred_check_branch
        %470 = sbr.rel (%p468) target = $region52
      $region51: #{tpu_custom_call.1} parent=47 // pred_region
        %p471 = scmp.lt.s32.totalorder %s17, 1
        %s472 = scalar_select %p471, %s17, 1
        %s473 = smul.addr %s472, 8
        %s474 = scalar_lea.vmem %s5, %s473
      $region52: #{tpu_custom_call.1} parent=47 // pred_fallthru
        _
    $region48: #{tpu_custom_call.1} parent=5 // pred_fallthru
      _
  $region6: #{tpu_custom_call.1} parent=0 // loop_footer
    %s15 = sadd.s32 1, %s11
  $region7: #{tpu_custom_call.1} parent=0 // loop_footer_branch
    %10 = sbr.rel target = $region3
  $region8: #{tpu_custom_call.1} parent=0 // loop_exit
    _

</llo_original>
